<compile_context>
chip_gen: v7x
topology: tpu7x:2x2x1
jax: 0.10.0
libtpu: 0.0.40
codegen_flags: <defaults>
</compile_context>

<pallas_src>
import functools
import math

import jax
import jax.numpy as jnp
from jax.experimental import pallas as pl
from jax.experimental.pallas import tpu as pltpu

_NEG_INF = -1e30


# --------------------------------------------------------------------------------------
# Per-generation configuration (VMEM headroom + tile defaults)
# --------------------------------------------------------------------------------------
def _tpu_config():
    kind = ""
    try:
        kind = jax.devices()[0].device_kind.lower()
    except Exception:
        pass
    vmem_cap = None
    try:
        vmem_cap = int(pltpu.get_tpu_info().vmem_capacity_bytes)
    except Exception:
        pass
    small_vmem = ("v7" in kind) or (vmem_cap is not None and vmem_cap <= 64 * 1024 * 1024)
    is_v5e = ("v5 lite" in kind) or ("v5e" in kind) or ("v5lite" in kind)
    return dict(
        # v7x has only 64 MiB physical VMEM per TensorCore -> leave headroom (48 MiB);
        # v5e/v6e have 128 MiB physical, 64 MiB is safe.
        vmem_limit=(48 if small_vmem else 64) * 1024 * 1024,
        q_block=256,
        kv_block=256 if is_v5e else 512,   # v5e: single vst slot + 128^2 MXU -> keep 256
        row_tile=512,                      # fewer weight re-streams than 256
        n_tile=256,
        k_tile=2048 if small_vmem else 4096,
    )


def _divisor_tile(dim, target, align):
    """Largest multiple of `align` that divides `dim` and is <= target; else `dim` (full)."""
    t = min(target, dim)
    t -= t % align
    while t >= align:
        if dim % t == 0:
            return t
        t -= align
    return dim


# --------------------------------------------------------------------------------------
# Linear: y = x @ W + b   (bf16 MXU operands, K-tiled f32 accumulation, f32 bias)
# --------------------------------------------------------------------------------------
def _linear_kernel(x_ref, w_ref, b_ref, o_ref, acc_ref):
    kk = pl.program_id(2)

    @pl.when(kk == 0)
    def _():
        acc_ref[...] = jnp.zeros_like(acc_ref)

    x = x_ref[...]
    if x.dtype != jnp.bfloat16:          # external f32 activations cast on the VPU
        x = x.astype(jnp.bfloat16)
    acc_ref[...] += jnp.dot(x, w_ref[...], preferred_element_type=jnp.float32)  # MXU

    @pl.when(kk == pl.num_programs(2) - 1)
    def _():
        o_ref[...] = (acc_ref[...] + b_ref[...].astype(jnp.float32)).astype(o_ref.dtype)


def linear_pallas(x2, w_bf16, b_f32, *, out_dtype, cfg):
    """x2: [rows, K]; w_bf16: [K, N] bf16; b_f32: [N] f32 -> [rows, N] out_dtype."""
    rows, K = x2.shape
    N = w_bf16.shape[1]

    tm = _divisor_tile(rows, cfg["row_tile"], 8)
    tn = _divisor_tile(N, cfg["n_tile"], 128)
    tk = _divisor_tile(K, cfg["k_tile"], 128)

    b2 = b_f32.reshape(1, N)

    cost = pl.CostEstimate(
        flops=2 * rows * K * N,
        transcendentals=0,
        bytes_accessed=int(rows * K * x2.dtype.itemsize
                           + (rows // tm) * K * N * 2
                           + rows * N * jnp.dtype(out_dtype).itemsize),
    )

    return pl.pallas_call(
        _linear_kernel,
        out_shape=jax.ShapeDtypeStruct((rows, N), out_dtype),
        grid_spec=pltpu.PrefetchScalarGridSpec(
            num_scalar_prefetch=0,
            grid=(rows // tm, N // tn, K // tk),
            in_specs=[
                pl.BlockSpec((tm, tk), lambda i, j, k: (i, k)),   # activation tile
                pl.BlockSpec((tk, tn), lambda i, j, k: (k, j)),   # bf16 weight tile
                pl.BlockSpec((1, tn), lambda i, j, k: (0, j)),    # f32 bias slab
            ],
            out_specs=pl.BlockSpec((tm, tn), lambda i, j, k: (i, j)),
            scratch_shapes=[pltpu.VMEM((tm, tn), jnp.float32)],   # f32 accumulator
        ),
        compiler_params=pltpu.CompilerParams(
            dimension_semantics=("parallel", "parallel", "arbitrary"),
            vmem_limit_bytes=cfg["vmem_limit"],
        ),
        cost_estimate=cost,
    )(x2, w_bf16, b2)


# --------------------------------------------------------------------------------------
# Flash attention over head-group column slabs of the flat [B*S, D] projections
# --------------------------------------------------------------------------------------
def _pick_head_group(n_heads, d_k):
    """Smallest head-group size G (dividing n_heads) with lane-dense G*d_k; else all heads
    (G*d_k == d_model == full minor dim, which is always a valid, lane-dense block)."""
    for g in range(1, n_heads + 1):
        if n_heads % g == 0 and (g * d_k) % 128 == 0:
            return g
    return n_heads


def _attention_kernel(q_ref, k_ref, v_ref, o_ref, m_sc, l_sc, acc_sc, *, heads_per_blk, d_k):
    ki = pl.program_id(3)

    @pl.when(ki == 0)
    def _():
        m_sc[...] = jnp.full(m_sc.shape, _NEG_INF, dtype=m_sc.dtype)
        l_sc[...] = jnp.zeros(l_sc.shape, dtype=l_sc.dtype)
        acc_sc[...] = jnp.zeros(acc_sc.shape, dtype=acc_sc.dtype)

    q = q_ref[...]   # (tq, G*d_k) bf16, already scaled by 1/sqrt(d_k) via the Q projection
    k = k_ref[...]   # (tk, G*d_k) bf16
    v = v_ref[...]   # (tk, G*d_k) bf16

    for g in range(heads_per_blk):
        lo = g * d_k
        # scores = Q K^T (scale already folded into Wq/bq) -- bf16 MXU, f32 accumulation.
        s = jax.lax.dot_general(
            q[:, lo:lo + d_k], k[:, lo:lo + d_k],
            (((1,), (1,)), ((), ())), preferred_element_type=jnp.float32)

        # online-softmax statistics stay in f32 (v5e has no bf16 VPU/EUP).
        m_prev = m_sc[g]
        m_new = jnp.maximum(m_prev, s.max(axis=-1, keepdims=True))
        alpha = jnp.exp(m_prev - m_new)
        p = jnp.exp(s - m_new)
        l_sc[g] = alpha * l_sc[g] + p.sum(axis=-1, keepdims=True)
        acc_sc[g] = alpha * acc_sc[g] + jnp.dot(
            p.astype(jnp.bfloat16), v[:, lo:lo + d_k],
            preferred_element_type=jnp.float32)
        m_sc[g] = m_new

    @pl.when(ki == pl.num_programs(3) - 1)
    def _():
        outs = [acc_sc[g] * pl.reciprocal(l_sc[g], approx=True)   # EUP slot, frees VALU
                for g in range(heads_per_blk)]
        o_ref[...] = jnp.concatenate(outs, axis=-1).astype(o_ref.dtype)   # lane-dense store


def attention_pallas(q2, k2, v2, *, batch, seq_q, seq_k, n_heads, d_k, cfg):
    """q2: [B*Sq, D] bf16 (pre-scaled); k2, v2: [B*Sk, D] bf16 -> ctx [B*Sq, D] bf16."""
    d_model = n_heads * d_k
    group = _pick_head_group(n_heads, d_k)
    gdk = group * d_k
    n_groups = n_heads // group

    # TODO(synk): ragged sequence lengths would need pad-to-8 plus key masking.
    assert seq_q % 8 == 0 and seq_k % 8 == 0, "seq lengths must be multiples of 8"
    tq = _divisor_tile(seq_q, cfg["q_block"], 8)
    tk = _divisor_tile(seq_k, cfg["kv_block"], 8)
    q_blocks = seq_q // tq
    k_blocks = seq_k // tk

    kernel = functools.partial(_attention_kernel, heads_per_blk=group, d_k=d_k)
    cost = pl.CostEstimate(
        flops=4 * batch * n_heads * seq_q * seq_k * d_k,
        transcendentals=batch * n_heads * seq_q * seq_k,
        bytes_accessed=int(2 * (2 * batch * seq_q * d_model
                                + 2 * batch * seq_k * d_model * q_blocks)),
    )

    return pl.pallas_call(
        kernel,
        out_shape=jax.ShapeDtypeStruct((batch * seq_q, d_model), jnp.bfloat16),
        grid_spec=pltpu.PrefetchScalarGridSpec(
            num_scalar_prefetch=0,
            grid=(batch, n_groups, q_blocks, k_blocks),
            in_specs=[
                pl.BlockSpec((tq, gdk), lambda b, h, qi, ki: (b * q_blocks + qi, h)),
                pl.BlockSpec((tk, gdk), lambda b, h, qi, ki: (b * k_blocks + ki, h)),
                pl.BlockSpec((tk, gdk), lambda b, h, qi, ki: (b * k_blocks + ki, h)),
            ],
            out_specs=pl.BlockSpec((tq, gdk), lambda b, h, qi, ki: (b * q_blocks + qi, h)),
            scratch_shapes=[
                pltpu.VMEM((group, tq, 1), jnp.float32),    # running max m (per head)
                pltpu.VMEM((group, tq, 1), jnp.float32),    # running denom l (per head)
                pltpu.VMEM((group, tq, d_k), jnp.float32),  # output accumulator (per head)
            ],
        ),
        compiler_params=pltpu.CompilerParams(
            dimension_semantics=("parallel", "parallel", "parallel", "arbitrary"),
            vmem_limit_bytes=cfg["vmem_limit"],
        ),
        cost_estimate=cost,
    )(q2, k2, v2)


# --------------------------------------------------------------------------------------
# Full MultiHeadAttention forward
# --------------------------------------------------------------------------------------
def prepare_params(params, *, n_heads):
    """One-time conversion of PyTorch-layout f32 params to kernel-ready form:
    weights bf16 (MXU-native, halves HBM/VMEM traffic), biases f32, and the 1/sqrt(d_k)
    attention scale folded into Wq/bq so the attention kernel does no scaling."""
    wq, bq, wk, bk, wv, bv, wo, bo = params
    d_k = wq.shape[1] // n_heads
    scale = 1.0 / math.sqrt(d_k)
    return ((wq * scale).astype(jnp.bfloat16), (bq * scale).astype(jnp.float32),
            wk.astype(jnp.bfloat16), bk.astype(jnp.float32),
            wv.astype(jnp.bfloat16), bv.astype(jnp.float32),
            wo.astype(jnp.bfloat16), bo.astype(jnp.float32))


def multi_head_attention(query, key, value, prepared_params, *, n_heads, mask=None, cfg=None):
    """query/key/value: [B, S, D] f32.  prepared_params from prepare_params()."""
    if mask is not None:
        # TODO(synk): masked attention (scores = -1e9 where mask == 0) not implemented.
        raise NotImplementedError("mask is not supported by the Pallas MHA kernels")
    # TODO(synk): dropout on attention probabilities implemented as inference-mode identity.
    cfg = dict(_tpu_config(), **(cfg or {}))

    B, Sq, D = query.shape
    _, Sk, _ = key.shape
    assert D % n_heads == 0
    d_k = D // n_heads
    wq, bq, wk, bk, wv, bv, wo, bo = prepared_params

    # Q/K/V projections -> bf16 [B*S, D] slabs consumed directly by the attention kernel;
    # the per-head layout is expressed in BlockSpec index maps (no XLA split/merge
    # transposes and no extra HBM round trips).
    q2 = linear_pallas(query.reshape(B * Sq, D), wq, bq, out_dtype=jnp.bfloat16, cfg=cfg)
    k2 = linear_pallas(key.reshape(B * Sk, D), wk, bk, out_dtype=jnp.bfloat16, cfg=cfg)
    v2 = linear_pallas(value.reshape(B * Sk, D), wv, bv, out_dtype=jnp.bfloat16, cfg=cfg)

    ctx = attention_pallas(q2, k2, v2, batch=B, seq_q=Sq, seq_k=Sk,
                           n_heads=n_heads, d_k=d_k, cfg=cfg)        # [B*Sq, D] bf16

    out = linear_pallas(ctx, wo, bo, out_dtype=query.dtype, cfg=cfg)  # output projection
    return out.reshape(B, Sq, D)


# --------------------------------------------------------------------------------------
# Pure-JAX f32 reference (mirrors the PyTorch forward, eval-mode dropout, mask=None)
# --------------------------------------------------------------------------------------
def _reference_mha(query, key, value, params, *, n_heads):
    wq, bq, wk, bk, wv, bv, wo, bo = params
    B, Sq, D = query.shape
    d_k = D // n_heads

    def lin(x, w, b):
        return jnp.einsum("bsd,de->bse", x, w) + b

    def split(y):
        return y.reshape(B, -1, n_heads, d_k).transpose(0, 2, 1, 3)

    q = split(lin(query, wq, bq))
    k = split(lin(key, wk, bk))
    v = split(lin(value, wv, bv))
    scores = jnp.einsum("bhqd,bhkd->bhqk", q, k) / math.sqrt(d_k)
    p = jax.nn.softmax(scores, axis=-1)
    ctx = jnp.einsum("bhqk,bhkd->bhqd", p, v)
    ctx = ctx.transpose(0, 2, 1, 3).reshape(B, Sq, D)
    return lin(ctx, wo, bo)


if __name__ == "__main__":
    key = jax.random.PRNGKey(0)
    B, S, D, H = 2, 8, 32, 4  # batch=2, seq=8, d_model=32, n_heads=4 (d_k=8)

    keys = jax.random.split(key, 11)
    q_in = jax.random.normal(keys[0], (B, S, D), dtype=jnp.float32)
    k_in = jax.random.normal(keys[1], (B, S, D), dtype=jnp.float32)
    v_in = jax.random.normal(keys[2], (B, S, D), dtype=jnp.float32)

    def mk_linear(kw, kb):
        w = jax.random.normal(kw, (D, D), dtype=jnp.float32) * (1.0 / math.sqrt(D))
        b = 0.1 * jax.random.normal(kb, (D,), dtype=jnp.float32)
        return w, b

    wq, bq = mk_linear(keys[3], keys[4])
    wk, bk = mk_linear(keys[5], keys[6])
    wv, bv = mk_linear(keys[7], keys[8])
    wo, bo = mk_linear(keys[9], keys[10])
    params = (wq, bq, wk, bk, wv, bv, wo, bo)

    prepared = prepare_params(params, n_heads=H)   # one-time bf16 conversion + scale folding
    out = multi_head_attention(q_in, k_in, v_in, prepared, n_heads=H)
    out = jax.block_until_ready(out)

    ref = _reference_mha(q_in, k_in, v_in, params, n_heads=H)
    assert out.shape == (B, S, D)
    # bf16 weight/activation streaming vs a pure-f32 reference; softmax stats are f32.
    max_err = float(jnp.max(jnp.abs(out - ref)))
    assert jnp.allclose(out, ref, atol=1e-1, rtol=5e-2), max_err

    print("KERNEL_OK")
</pallas_src>

<mosaic_0001>
module attributes {stable_mosaic.version = 11 : i64} {
  func.func @_linear_kernel(%arg0: i32, %arg1: i32, %arg2: i32, %arg3: memref<16x32xf32, #tpu.memory_space<vmem>>, %arg4: memref<32x32xbf16, #tpu.memory_space<vmem>>, %arg5: memref<1x32xf32, #tpu.memory_space<vmem>>, %arg6: memref<16x32xbf16, #tpu.memory_space<vmem>>, %arg7: memref<16x32xf32, #tpu.memory_space<vmem>>) attributes {dimension_semantics = [#tpu.dimension_semantics<parallel>, #tpu.dimension_semantics<parallel>, #tpu.dimension_semantics<arbitrary>], iteration_bounds = array<i64: 1, 1, 1>, scalar_prefetch = 0 : i64, scratch_operands = 1 : i64, tpu.core_type = #tpu.core_type<tc>, window_params = [{transform_indices = @transform_0, window_bounds = array<i64: 16, 32>}, {transform_indices = @transform_1, window_bounds = array<i64: 32, 32>}, {transform_indices = @transform_2, window_bounds = array<i64: 1, 32>}, {transform_indices = @transform_3, window_bounds = array<i64: 16, 32>}]} {
    %c0_i32 = arith.constant 0 : i32
    %0 = arith.cmpi eq, %arg2, %c0_i32 : i32
    %1 = arith.extui %0 : i1 to i32
    %c0_i32_0 = arith.constant 0 : i32
    %2 = arith.cmpi ne, %1, %c0_i32_0 : i32
    scf.if %2 {
      %cst_10 = arith.constant 0.000000e+00 : f32
      %13 = vector.broadcast %cst_10 : f32 to vector<16x32xf32>
      %c0_11 = arith.constant 0 : index
      %c0_12 = arith.constant 0 : index
      %14 = vector.load %arg7[%c0_11, %c0_12] : memref<16x32xf32, #tpu.memory_space<vmem>>, vector<16x32xf32>
      tpu.vector_store %arg7[%c0_11, %c0_12], %13 {strides = array<i32>} : memref<16x32xf32, #tpu.memory_space<vmem>>, vector<16x32xf32>,
    } else {
    }
    %c0 = arith.constant 0 : index
    %c0_1 = arith.constant 0 : index
    %3 = vector.load %arg3[%c0, %c0_1] : memref<16x32xf32, #tpu.memory_space<vmem>>, vector<16x32xf32>
    %4 = arith.truncf %3 : vector<16x32xf32> to vector<16x32xbf16>
    %c0_2 = arith.constant 0 : index
    %c0_3 = arith.constant 0 : index
    %5 = vector.load %arg7[%c0_2, %c0_3] : memref<16x32xf32, #tpu.memory_space<vmem>>, vector<16x32xf32>
    %c0_4 = arith.constant 0 : index
    %c0_5 = arith.constant 0 : index
    %6 = vector.load %arg4[%c0_4, %c0_5] : memref<32x32xbf16, #tpu.memory_space<vmem>>, vector<32x32xbf16>
    %cst = arith.constant dense<0.000000e+00> : vector<16x32xf32>
    %7 = tpu.matmul %4, %6, %cst {dimension_numbers = #tpu.dot_dimension_numbers<[1], [0], [0], [1], [0, 0, 1, 1], [], []>} : vector<16x32xbf16>, vector<32x32xbf16>, vector<16x32xf32> -> vector<16x32xf32>
    %8 = arith.addf %5, %7 : vector<16x32xf32>
    %c0_6 = arith.constant 0 : index
    %c0_7 = arith.constant 0 : index
    %9 = vector.load %arg7[%c0_6, %c0_7] : memref<16x32xf32, #tpu.memory_space<vmem>>, vector<16x32xf32>
    tpu.vector_store %arg7[%c0_6, %c0_7], %8 {strides = array<i32>} : memref<16x32xf32, #tpu.memory_space<vmem>>, vector<16x32xf32>,
    %c0_i32_8 = arith.constant 0 : i32
    %10 = arith.cmpi eq, %arg2, %c0_i32_8 : i32
    %11 = arith.extui %10 : i1 to i32
    %c0_i32_9 = arith.constant 0 : i32
    %12 = arith.cmpi ne, %11, %c0_i32_9 : i32
    scf.if %12 {
      %c0_10 = arith.constant 0 : index
      %c0_11 = arith.constant 0 : index
      %13 = vector.load %arg7[%c0_10, %c0_11] : memref<16x32xf32, #tpu.memory_space<vmem>>, vector<16x32xf32>
      %c0_12 = arith.constant 0 : index
      %c0_13 = arith.constant 0 : index
      %14 = vector.load %arg5[%c0_12, %c0_13] : memref<1x32xf32, #tpu.memory_space<vmem>>, vector<1x32xf32>
      %15 = vector.broadcast %14 : vector<1x32xf32> to vector<16x32xf32>
      %16 = arith.addf %13, %15 : vector<16x32xf32>
      %17 = arith.truncf %16 : vector<16x32xf32> to vector<16x32xbf16>
      %c0_14 = arith.constant 0 : index
      %c0_15 = arith.constant 0 : index
      %18 = vector.load %arg6[%c0_14, %c0_15] : memref<16x32xbf16, #tpu.memory_space<vmem>>, vector<16x32xbf16>
      tpu.vector_store %arg6[%c0_14, %c0_15], %17 {strides = array<i32>} : memref<16x32xbf16, #tpu.memory_space<vmem>>, vector<16x32xbf16>,
    } else {
    }
    return
  }
  func.func @transform_0(%arg0: i32, %arg1: i32, %arg2: i32) -> (i32, i32) {
    %c0_i32 = arith.constant 0 : i32
    return %arg0, %arg2 : i32, i32
  }
  func.func @transform_1(%arg0: i32, %arg1: i32, %arg2: i32) -> (i32, i32) {
    %c0_i32 = arith.constant 0 : i32
    return %arg2, %arg1 : i32, i32
  }
  func.func @transform_2(%arg0: i32, %arg1: i32, %arg2: i32) -> (i32, i32) {
    %c0_i32 = arith.constant 0 : i32
    %c0_i32_0 = arith.constant 0 : i32
    return %c0_i32, %arg1 : i32, i32
  }
  func.func @transform_3(%arg0: i32, %arg1: i32, %arg2: i32) -> (i32, i32) {
    %c0_i32 = arith.constant 0 : i32
    return %arg0, %arg1 : i32, i32
  }
}

</mosaic_0001>

<llo_original>
// kernel: tpu_custom_call.1
$region0: #{tpu_custom_call.1}
  #allocation0 [shape = 'u32[]', space=smem, size = 0x4, offset = 0x4, fixed_abs, tag = 'smem constant byte address 0x4 - core index']
  #allocation1 [shape = 'u32[144,128]{1,0:T(1,128)}', space=vmem, size = 0x12000, scoped, tag = 'internal scratch']
  #allocation2 [shape = 'f32[16,32]{1,0:T(8,128)}', space=vmem, size = 0x2000, scoped, tag = 'scratch operand']
  %s0 = inlined_call_operand.hbm [shape: f32[16,32], index: 0, kind: input, shape index: {}]
  %s1 = inlined_call_operand.hbm [shape: bf16[32,32], index: 1, kind: input, shape index: {}]
  %s2 = inlined_call_operand.hbm [shape: f32[1,32], index: 2, kind: input, shape index: {}]
  %s3 = inlined_call_operand.hbm [shape: bf16[16,32], index: 3, kind: output, shape index: {}]
  %s4 = sld [smem:[#allocation0]]
  $region42: #{tpu_custom_call.1} parent=0
    _
  %s6 = ssub.s32 1, %s4
  %s7 = scalar_select 0, %s6, %s4
  $region1: #{tpu_custom_call.1} parent=0
    #allocation3 [shape = 'u8[8192]{0}', space=vmem, size = 0x2000, scoped, tag = 'input window, operand 0, single buffered']
    #allocation4 [shape = 's32[1]{0}', space=sflag, size = 0x4, scoped, tag = 'scoped memory for tpu_custom_call.1']
    #allocation5 [shape = 's32[1]{0}', space=sflag, size = 0x4, scoped, tag = 'scoped memory for tpu_custom_call.1']
    #allocation6 [shape = 'u8[8192]{0}', space=vmem, size = 0x2000, scoped, tag = 'input window, operand 1, single buffered']
    #allocation7 [shape = 's32[1]{0}', space=sflag, size = 0x4, scoped, tag = 'scoped memory for tpu_custom_call.1']
    #allocation8 [shape = 'u8[512]{0}', space=vmem, size = 0x400, scoped, tag = 'input window, operand 2, single buffered']
    #allocation9 [shape = 'u8[4096]{0}', space=vmem, size = 0x1000, scoped, tag = 'output window, operand 0, single buffered']
    %8 = vsyncpa [#allocation4], 0
    %9 = vsyncpa [#allocation7], 0
    %10 = vsyncpa [#allocation5], 0
    // Predicated region
    $region2: #{tpu_custom_call.1} parent=1 // pred_check
      _
    $region3: #{tpu_custom_call.1} parent=1 // pred_check_branch
      %12 = sbr.rel (0) target = $region5
    $region4: #{tpu_custom_call.1} parent=1 // pred_region
      %s14 = ssub.s32 256, 256
      %15 = vsyncadd [#allocation4], %s14
      %s16 = sshll.u32 [#allocation3], 4
      %s17 = int_to_ptr.vmem [resolvable:$true] %s16
      %22 = dma.hbm_to_vmem [thread:$0]  %s0, 256, %s17, [#allocation4], 128, 128, 8
    $region5: #{tpu_custom_call.1} parent=1 // pred_fallthru
      _
    // Predicated region
    $region6: #{tpu_custom_call.1} parent=1 // pred_check
      _
    $region7: #{tpu_custom_call.1} parent=1 // pred_check_branch
      %24 = sbr.rel (0) target = $region9
    $region8: #{tpu_custom_call.1} parent=1 // pred_region
      %s26 = ssub.s32 256, 256
      %27 = vsyncadd [#allocation7], %s26
      %s28 = sshll.u32 [#allocation6], 4
      %s29 = int_to_ptr.vmem [resolvable:$true] %s28
      %34 = dma.hbm_to_vmem [thread:$0]  %s1, 256, %s29, [#allocation7], 64, 64, 4
    $region9: #{tpu_custom_call.1} parent=1 // pred_fallthru
      _
    // Predicated region
    $region10: #{tpu_custom_call.1} parent=1 // pred_check
      _
    $region11: #{tpu_custom_call.1} parent=1 // pred_check_branch
      %36 = sbr.rel (0) target = $region13
    $region12: #{tpu_custom_call.1} parent=1 // pred_region
      %s38 = ssub.s32 16, 16
      %39 = vsyncadd [#allocation7], %s38
      %s41 = sshll.u32 [#allocation8], 4
      %s42 = int_to_ptr.vmem [resolvable:$true] %s41
      %44 = dma.hbm_to_vmem [thread:$0]  %s2, 16, %s42, [#allocation7]
    $region13: #{tpu_custom_call.1} parent=1 // pred_fallthru
      _
    // Predicated region
    $region14: #{tpu_custom_call.1} parent=1 // pred_check
      _
    $region15: #{tpu_custom_call.1} parent=1 // pred_check_branch
      %46 = sbr.rel (0) target = $region17
    $region16: #{tpu_custom_call.1} parent=1 // pred_region
      %47 = dma.done [#allocation4], 256
    $region17: #{tpu_custom_call.1} parent=1 // pred_fallthru
      _
    // Predicated region
    $region18: #{tpu_custom_call.1} parent=1 // pred_check
      _
    $region19: #{tpu_custom_call.1} parent=1 // pred_check_branch
      %49 = sbr.rel (0) target = $region21
    $region20: #{tpu_custom_call.1} parent=1 // pred_region
      %50 = dma.done [#allocation7], 256
    $region21: #{tpu_custom_call.1} parent=1 // pred_fallthru
      _
    // Predicated region
    $region22: #{tpu_custom_call.1} parent=1 // pred_check
      _
    $region23: #{tpu_custom_call.1} parent=1 // pred_check_branch
      %52 = sbr.rel (0) target = $region25
    $region24: #{tpu_custom_call.1} parent=1 // pred_region
      %53 = dma.done [#allocation7], 16
    $region25: #{tpu_custom_call.1} parent=1 // pred_fallthru
      _
    %p55 = scmp.eq.s32.totalorder 0, 0
    // Predicated region
    $region26: #{tpu_custom_call.1} parent=1 // pred_check
      %p56 = pneg %p55
    $region27: #{tpu_custom_call.1} parent=1 // pred_check_branch
      %58 = sbr.rel (%p56) target = $region29
    $region28: #{tpu_custom_call.1} parent=1 // pred_region
      %vm59 = vcmask 261120
      %60 = vst.msk [vmem:[#allocation2] sm:$0xff] %vm59, 0.0
      %61 = vst.msk [vmem:[#allocation2 + $0x8] sm:$0xff] %vm59, 0.0
    $region29: #{tpu_custom_call.1} parent=1 // pred_fallthru
      _
    %v62 = vld [vmem:[#allocation3] sm:$0xff]
    %v63 = vld [vmem:[#allocation3 + $0x8] sm:$0xff]
    %v64 = vpack.c.bf16 %v63, %v62
    %v65 = vld [vmem:[#allocation2] sm:$0xff]
    %v66 = vld [vmem:[#allocation2 + $0x8] sm:$0xff]
    %v67 = vld [vmem:[#allocation6] sm:$0xf]
    %v68 = vld [vmem:[#allocation6 + $0x4] sm:$0xf]
    %v69 = vld [vmem:[#allocation6 + $0x8] sm:$0xf]
    %v70 = vld [vmem:[#allocation6 + $0xc] sm:$0xf]
    %v75 = vunpack.c.l.b16 %v67
    %v76 = vunpack.c.l.b16 %v68
    %v77 = vunpack.c.l.b16 %v69
    %v78 = vunpack.c.l.b16 %v70
    %v79 = vpack.c.b16 %v76, %v75
    %v80 = vpack.c.b16 %v78, %v77
    %vm83 = vcmask 261120
    %v85 = vsel %vm83, %v64, 0
    %87 = vmatprep.subr.bf16.mxu0 0
    %88 = vmatpush1.bf16.msra.mxu0 %v79
    %89 = vmatprep.subr.bf16.mxu0 0
    %90 = vmatpush1.bf16.msra.mxu0 %v80
    %91 = vmatprep.subr.bf16.mxu0 0
    %92 = vmatpush1.bf16.msra.mxu0 0
    %93 = vmatprep.subr.bf16.mxu0 0
    %94 = vmatpush1.bf16.msra.mxu0 0
    %95 = vmatprep.subr.bf16.mxu0 0
    %96 = vmatpush1.bf16.msra.mxu0 0
    %97 = vmatprep.subr.bf16.mxu0 0
    %98 = vmatpush1.bf16.msra.mxu0 0
    %99 = vmatprep.subr.bf16.mxu0 0
    %100 = vmatpush1.bf16.msra.mxu0 0
    %101 = vmatprep.subr.bf16.mxu0 0
    %102 = vmatpush1.bf16.msra.mxu0 0
    %103 = vmatprep.subr.bf16.mxu0 0
    %104 = vmatpush1.bf16.msra.mxu0 0
    %105 = vmatprep.subr.bf16.mxu0 0
    %106 = vmatpush1.bf16.msra.mxu0 0
    %107 = vmatprep.subr.bf16.mxu0 0
    %108 = vmatpush1.bf16.msra.mxu0 0
    %109 = vmatprep.subr.bf16.mxu0 0
    %110 = vmatpush1.bf16.msra.mxu0 0
    %111 = vmatprep.subr.bf16.mxu0 0
    %112 = vmatpush1.bf16.msra.mxu0 0
    %113 = vmatprep.subr.bf16.mxu0 0
    %114 = vmatpush1.bf16.msra.mxu0 0
    %115 = vmatprep.subr.bf16.mxu0 0
    %116 = vmatpush1.bf16.msra.mxu0 0
    %117 = vmatprep.subr.bf16.mxu0 0
    %118 = vmatpush1.bf16.msra.mxu0 0
    %119 = vmatprep.mubr.bf16.mxu0 0
    %120 = vmatmul.mubr.bf16.gmra.mrb[0].mxu0 %v85
    %v121 = vpop.f32.mrb[0].mxu0
    %v122 = vadd.f32 0.0, %v121
    %v123 = vpop.f32.mrb[0].mxu0
    %v124 = vpop.f32.mrb[0].mxu0
    %v125 = vadd.f32 0.0, %v124
    %v126 = vpop.f32.mrb[0].mxu0
    %127 = vdwg.mxu0
    %v128 = vadd.f32 %v65, %v122
    %v129 = vadd.f32 %v66, %v125
    %130 = vst.msk [vmem:[#allocation2] sm:$0xff] %vm83, %v128
    %131 = vst.msk [vmem:[#allocation2 + $0x8] sm:$0xff] %vm83, %v129
    // Predicated region
    $region30: #{tpu_custom_call.1} parent=1 // pred_check
      %p132 = pneg %p55
    $region31: #{tpu_custom_call.1} parent=1 // pred_check_branch
      %134 = sbr.rel (%p132) target = $region33
    $region32: #{tpu_custom_call.1} parent=1 // pred_region
      %v135 = vld [vmem:[#allocation2] sm:$0xff]
      %v136 = vld [vmem:[#allocation2 + $0x8] sm:$0xff]
      %v137 = vld [vmem:[#allocation8] sm:$0x1]
      %v139 = vlaneseq
      %v140 = vshrl.u32 %v139, 7
      %v141 = vsub.s32 0, %v140
      %v142 = vrot.slane %v137, %v141
      %v144 = vadd.f32 %v135, %v142
      %v145 = vadd.f32 %v136, %v142
      %v146 = vpack.c.bf16 %v145, %v144
      %v148 = vunpack.c.l.b16 %v146
      %v149 = vunpack.c.h.b16 %v146
      %v150 = vpack.c.b16 %v148, %v148
      %v151 = vpack.c.b16 %v149, %v149
      %vm154 = vcmask 257024
      %155 = vst.msk [vmem:[#allocation9] sm:$0xf] %vm154, %v150
      %156 = vst.msk [vmem:[#allocation9 + $0x4] sm:$0xf] %vm154, %v151
    $region33: #{tpu_custom_call.1} parent=1 // pred_fallthru
      _
    // Predicated region
    $region34: #{tpu_custom_call.1} parent=1 // pred_check
      _
    $region35: #{tpu_custom_call.1} parent=1 // pred_check_branch
      %158 = sbr.rel (0) target = $region37
    $region36: #{tpu_custom_call.1} parent=1 // pred_region
      %s160 = ssub.s32 128, 128
      %161 = vsyncadd [#allocation5], %s160
      %s162 = sshll.u32 [#allocation9], 4
      %s163 = int_to_ptr.vmem [resolvable:$true] %s162
      %168 = dma.vmem_to_hbm [thread:$0]  %s163, 128, %s3, [#allocation5], 64, 64, 4
    $region37: #{tpu_custom_call.1} parent=1 // pred_fallthru
      _
    // Predicated region
    $region38: #{tpu_custom_call.1} parent=1 // pred_check
      _
    $region39: #{tpu_custom_call.1} parent=1 // pred_check_branch
      %170 = sbr.rel (0) target = $region41
    $region40: #{tpu_custom_call.1} parent=1 // pred_region
      %171 = dma.done [#allocation5], 128
    $region41: #{tpu_custom_call.1} parent=1 // pred_fallthru
      _
    %172 = vsyncpa [#allocation4], 1
    %173 = vsyncpa [#allocation7], 1
    %174 = vsyncpa [#allocation5], 1

</llo_original>
